<compile_context>
chip_gen: v6e
topology: v6e:2x2x1
jax: 0.10.0
libtpu: 0.0.40
codegen_flags: <defaults>
</compile_context>

<pallas_src>
import jax
import jax.numpy as jnp
from jax.experimental import pallas as pl
from jax.experimental.pallas import tpu as pltpu

ACT = jnp.tanh          # ACTIVATION = F.tanh
B_INIT = -0.2
N_HIDDEN = 8
N_LAYERS = N_HIDDEN + 1 # 8 hidden fc layers + predict
HID = 10                # real hidden width
IN = 1                  # real input width
KPAD = 16               # contraction dim padded to 16 sublanes (>= HID)
FPAD = 128              # output feature dim padded to 128 lanes (lane-dense)
BATCH = 32              # batch size (multiple of 8 sublanes)


def mlp_kernel(x_ref, w_ref, b_ref, pre_ref, out_ref):
    """Whole MLP forward in one no-grid kernel invocation.

    x_ref  : (B, KPAD)              padded input (only col 0 is real)
    w_ref  : (N_LAYERS, KPAD, FPAD) padded W^T per layer (zero pad rows/cols)
    b_ref  : (N_LAYERS, 1, FPAD)    padded biases
    pre_ref: (N_HIDDEN, B, FPAD)    pre-activations of hidden layers 1..8
    out_ref: (B, FPAD)              padded prediction (col 0 is real)
    """
    x = x_ref[...]                                    # (B, KPAD) f32
    for i in range(N_HIDDEN):                         # static unroll (8 iters)
        z = jnp.dot(x, w_ref[i],
                    preferred_element_type=jnp.float32) + b_ref[i]  # (B, FPAD)
        pre_ref[i] = z                                # lane-dense store
        # pad lanes of z are exactly 0 (zero weight cols + zero bias pad),
        # tanh(0) = 0, so only the first KPAD lanes feed the next matmul.
        x = ACT(z[:, :KPAD])                          # (B, KPAD)
    out_ref[...] = jnp.dot(x, w_ref[N_HIDDEN],
                           preferred_element_type=jnp.float32) + b_ref[N_HIDDEN]


def net_forward(x, params):
    """x: (BATCH, 1) float32. Returns (out, layer_input, pre_activation)."""
    w_all, b_all = params
    B = x.shape[0]

    x_pad = jnp.zeros((B, KPAD), jnp.float32).at[:, :IN].set(x)

    vmem = pl.BlockSpec(memory_space=pltpu.MemorySpace.VMEM)
    pre_pad, out_pad = pl.pallas_call(
        mlp_kernel,
        out_shape=(
            jax.ShapeDtypeStruct((N_HIDDEN, B, FPAD), jnp.float32),
            jax.ShapeDtypeStruct((B, FPAD), jnp.float32),
        ),
        in_specs=[vmem, vmem, vmem],
        out_specs=(vmem, vmem),
    )(x_pad, w_all, b_all)

    out = out_pad[:, :IN]                                         # (B, 1)
    pre_activation = [x] + [pre_pad[k, :, :HID] for k in range(N_HIDDEN)]
    # layer_input = [x, tanh(pre_1), ..., tanh(pre_8)] (do_bn=False path),
    # recomputed host-side on the sliced (B, HID) arrays — negligible cost.
    layer_input = [x] + [ACT(pre_pad[k, :, :HID]) for k in range(N_HIDDEN)]
    return out, layer_input, pre_activation


def init_params(key):
    """Deterministic init matching the module's _set_init:
       weight ~ N(0, 0.1), bias = B_INIT. Weights stored transposed (in, out),
       K padded to KPAD sublanes, output padded to FPAD lanes."""
    keys = jax.random.split(key, N_LAYERS)
    w_all = jnp.zeros((N_LAYERS, KPAD, FPAD), jnp.float32)
    b_all = jnp.zeros((N_LAYERS, 1, FPAD), jnp.float32)
    true_w, true_b = [], []
    for i in range(N_HIDDEN):
        in_sz = IN if i == 0 else HID
        w = 0.1 * jax.random.normal(keys[i], (in_sz, HID), jnp.float32)  # W^T
        b = jnp.full((HID,), B_INIT, jnp.float32)
        w_all = w_all.at[i, :in_sz, :HID].set(w)
        b_all = b_all.at[i, 0, :HID].set(b)
        true_w.append(w)
        true_b.append(b)
    wp = 0.1 * jax.random.normal(keys[N_HIDDEN], (HID, IN), jnp.float32)  # W^T
    bp = jnp.full((IN,), B_INIT, jnp.float32)
    w_all = w_all.at[N_HIDDEN, :HID, :IN].set(wp)
    b_all = b_all.at[N_HIDDEN, 0, :IN].set(bp)
    return (w_all, b_all), (true_w, true_b, wp, bp)


def reference_forward(x, true_params):
    """Pure-JAX reference of the PyTorch forward (do_bn=False)."""
    true_w, true_b, wp, bp = true_params
    pre_activation = [x]
    layer_input = [x]
    h = x
    for i in range(N_HIDDEN):
        z = h @ true_w[i] + true_b[i]
        pre_activation.append(z)
        h = ACT(z)
        layer_input.append(h)
    out = h @ wp + bp
    return out, layer_input, pre_activation


if __name__ == "__main__":
    key = jax.random.PRNGKey(0)
    kx, kp = jax.random.split(key)
    x = jax.random.normal(kx, (BATCH, IN), jnp.float32)

    params, true_params = init_params(kp)

    out, layer_input, pre_activation = net_forward(x, params)
    jax.block_until_ready(out)

    # correctness check against plain-JAX reference
    ref_out, ref_lin, ref_pre = reference_forward(x, true_params)
    assert jnp.allclose(out, ref_out, atol=1e-5), "out mismatch"
    for a, b in zip(layer_input, ref_lin):
        assert jnp.allclose(a, b, atol=1e-5), "layer_input mismatch"
    for a, b in zip(pre_activation, ref_pre):
        assert jnp.allclose(a, b, atol=1e-5), "pre_activation mismatch"

    print("KERNEL_OK")
</pallas_src>

<mosaic_0001>
module attributes {stable_mosaic.version = 11 : i64} {
  func.func @mlp_kernel(%arg0: memref<32x16xf32, #tpu.memory_space<vmem>>, %arg1: memref<9x16x128xf32, #tpu.memory_space<vmem>>, %arg2: memref<9x1x128xf32, #tpu.memory_space<vmem>>, %arg3: memref<8x32x128xf32, #tpu.memory_space<vmem>>, %arg4: memref<32x128xf32, #tpu.memory_space<vmem>>) attributes {dimension_semantics = [], scalar_prefetch = 0 : i64, scratch_operands = 0 : i64, tpu.core_type = #tpu.core_type<tc>} {
    %c0 = arith.constant 0 : index
    %c0_0 = arith.constant 0 : index
    %0 = vector.load %arg0[%c0, %c0_0] : memref<32x16xf32, #tpu.memory_space<vmem>>, vector<32x16xf32>
    %c0_1 = arith.constant 0 : index
    %c0_2 = arith.constant 0 : index
    %c0_3 = arith.constant 0 : index
    %1 = vector.load %arg1[%c0_1, %c0_2, %c0_3] : memref<9x16x128xf32, #tpu.memory_space<vmem>>, vector<1x16x128xf32>
    %2 = vector.shape_cast %1 : vector<1x16x128xf32> to vector<16x128xf32>
    %cst = arith.constant dense<0.000000e+00> : vector<32x128xf32>
    %3 = tpu.matmul %0, %2, %cst {dimension_numbers = #tpu.dot_dimension_numbers<[1], [0], [0], [1], [0, 0, 1, 1], [], []>} : vector<32x16xf32>, vector<16x128xf32>, vector<32x128xf32> -> vector<32x128xf32>
    %c0_4 = arith.constant 0 : index
    %c0_5 = arith.constant 0 : index
    %c0_6 = arith.constant 0 : index
    %4 = vector.load %arg2[%c0_4, %c0_5, %c0_6] : memref<9x1x128xf32, #tpu.memory_space<vmem>>, vector<1x1x128xf32>
    %5 = vector.shape_cast %4 : vector<1x1x128xf32> to vector<1x128xf32>
    %6 = vector.broadcast %5 : vector<1x128xf32> to vector<32x128xf32>
    %7 = arith.addf %3, %6 : vector<32x128xf32>
    %c0_7 = arith.constant 0 : index
    %c0_8 = arith.constant 0 : index
    %c0_9 = arith.constant 0 : index
    %8 = vector.load %arg3[%c0_7, %c0_8, %c0_9] : memref<8x32x128xf32, #tpu.memory_space<vmem>>, vector<1x32x128xf32>
    %9 = vector.shape_cast %8 : vector<1x32x128xf32> to vector<32x128xf32>
    %10 = vector.shape_cast %7 : vector<32x128xf32> to vector<1x32x128xf32>
    tpu.vector_store %arg3[%c0_7, %c0_8, %c0_9], %10 {strides = array<i32>} : memref<8x32x128xf32, #tpu.memory_space<vmem>>, vector<1x32x128xf32>,
    %11 = vector.extract_strided_slice %7 {offsets = [0, 0], sizes = [32, 16], strides = [1, 1]} : vector<32x128xf32> to vector<32x16xf32>
    %12 = math.tanh %11 : vector<32x16xf32>
    %c1 = arith.constant 1 : index
    %c0_10 = arith.constant 0 : index
    %c0_11 = arith.constant 0 : index
    %13 = vector.load %arg1[%c1, %c0_10, %c0_11] : memref<9x16x128xf32, #tpu.memory_space<vmem>>, vector<1x16x128xf32>
    %14 = vector.shape_cast %13 : vector<1x16x128xf32> to vector<16x128xf32>
    %cst_12 = arith.constant dense<0.000000e+00> : vector<32x128xf32>
    %15 = tpu.matmul %12, %14, %cst_12 {dimension_numbers = #tpu.dot_dimension_numbers<[1], [0], [0], [1], [0, 0, 1, 1], [], []>} : vector<32x16xf32>, vector<16x128xf32>, vector<32x128xf32> -> vector<32x128xf32>
    %c1_13 = arith.constant 1 : index
    %c0_14 = arith.constant 0 : index
    %c0_15 = arith.constant 0 : index
    %16 = vector.load %arg2[%c1_13, %c0_14, %c0_15] : memref<9x1x128xf32, #tpu.memory_space<vmem>>, vector<1x1x128xf32>
    %17 = vector.shape_cast %16 : vector<1x1x128xf32> to vector<1x128xf32>
    %18 = vector.broadcast %17 : vector<1x128xf32> to vector<32x128xf32>
    %19 = arith.addf %15, %18 : vector<32x128xf32>
    %c1_16 = arith.constant 1 : index
    %c0_17 = arith.constant 0 : index
    %c0_18 = arith.constant 0 : index
    %20 = vector.load %arg3[%c1_16, %c0_17, %c0_18] : memref<8x32x128xf32, #tpu.memory_space<vmem>>, vector<1x32x128xf32>
    %21 = vector.shape_cast %20 : vector<1x32x128xf32> to vector<32x128xf32>
    %22 = vector.shape_cast %19 : vector<32x128xf32> to vector<1x32x128xf32>
    tpu.vector_store %arg3[%c1_16, %c0_17, %c0_18], %22 {strides = array<i32>} : memref<8x32x128xf32, #tpu.memory_space<vmem>>, vector<1x32x128xf32>,
    %23 = vector.extract_strided_slice %19 {offsets = [0, 0], sizes = [32, 16], strides = [1, 1]} : vector<32x128xf32> to vector<32x16xf32>
    %24 = math.tanh %23 : vector<32x16xf32>
    %c2 = arith.constant 2 : index
    %c0_19 = arith.constant 0 : index
    %c0_20 = arith.constant 0 : index
    %25 = vector.load %arg1[%c2, %c0_19, %c0_20] : memref<9x16x128xf32, #tpu.memory_space<vmem>>, vector<1x16x128xf32>
    %26 = vector.shape_cast %25 : vector<1x16x128xf32> to vector<16x128xf32>
    %cst_21 = arith.constant dense<0.000000e+00> : vector<32x128xf32>
    %27 = tpu.matmul %24, %26, %cst_21 {dimension_numbers = #tpu.dot_dimension_numbers<[1], [0], [0], [1], [0, 0, 1, 1], [], []>} : vector<32x16xf32>, vector<16x128xf32>, vector<32x128xf32> -> vector<32x128xf32>
    %c2_22 = arith.constant 2 : index
    %c0_23 = arith.constant 0 : index
    %c0_24 = arith.constant 0 : index
    %28 = vector.load %arg2[%c2_22, %c0_23, %c0_24] : memref<9x1x128xf32, #tpu.memory_space<vmem>>, vector<1x1x128xf32>
    %29 = vector.shape_cast %28 : vector<1x1x128xf32> to vector<1x128xf32>
    %30 = vector.broadcast %29 : vector<1x128xf32> to vector<32x128xf32>
    %31 = arith.addf %27, %30 : vector<32x128xf32>
    %c2_25 = arith.constant 2 : index
    %c0_26 = arith.constant 0 : index
    %c0_27 = arith.constant 0 : index
    %32 = vector.load %arg3[%c2_25, %c0_26, %c0_27] : memref<8x32x128xf32, #tpu.memory_space<vmem>>, vector<1x32x128xf32>
    %33 = vector.shape_cast %32 : vector<1x32x128xf32> to vector<32x128xf32>
    %34 = vector.shape_cast %31 : vector<32x128xf32> to vector<1x32x128xf32>
    tpu.vector_store %arg3[%c2_25, %c0_26, %c0_27], %34 {strides = array<i32>} : memref<8x32x128xf32, #tpu.memory_space<vmem>>, vector<1x32x128xf32>,
    %35 = vector.extract_strided_slice %31 {offsets = [0, 0], sizes = [32, 16], strides = [1, 1]} : vector<32x128xf32> to vector<32x16xf32>
    %36 = math.tanh %35 : vector<32x16xf32>
    %c3 = arith.constant 3 : index
    %c0_28 = arith.constant 0 : index
    %c0_29 = arith.constant 0 : index
    %37 = vector.load %arg1[%c3, %c0_28, %c0_29] : memref<9x16x128xf32, #tpu.memory_space<vmem>>, vector<1x16x128xf32>
    %38 = vector.shape_cast %37 : vector<1x16x128xf32> to vector<16x128xf32>
    %cst_30 = arith.constant dense<0.000000e+00> : vector<32x128xf32>
    %39 = tpu.matmul %36, %38, %cst_30 {dimension_numbers = #tpu.dot_dimension_numbers<[1], [0], [0], [1], [0, 0, 1, 1], [], []>} : vector<32x16xf32>, vector<16x128xf32>, vector<32x128xf32> -> vector<32x128xf32>
    %c3_31 = arith.constant 3 : index
    %c0_32 = arith.constant 0 : index
    %c0_33 = arith.constant 0 : index
    %40 = vector.load %arg2[%c3_31, %c0_32, %c0_33] : memref<9x1x128xf32, #tpu.memory_space<vmem>>, vector<1x1x128xf32>
    %41 = vector.shape_cast %40 : vector<1x1x128xf32> to vector<1x128xf32>
    %42 = vector.broadcast %41 : vector<1x128xf32> to vector<32x128xf32>
    %43 = arith.addf %39, %42 : vector<32x128xf32>
    %c3_34 = arith.constant 3 : index
    %c0_35 = arith.constant 0 : index
    %c0_36 = arith.constant 0 : index
    %44 = vector.load %arg3[%c3_34, %c0_35, %c0_36] : memref<8x32x128xf32, #tpu.memory_space<vmem>>, vector<1x32x128xf32>
    %45 = vector.shape_cast %44 : vector<1x32x128xf32> to vector<32x128xf32>
    %46 = vector.shape_cast %43 : vector<32x128xf32> to vector<1x32x128xf32>
    tpu.vector_store %arg3[%c3_34, %c0_35, %c0_36], %46 {strides = array<i32>} : memref<8x32x128xf32, #tpu.memory_space<vmem>>, vector<1x32x128xf32>,
    %47 = vector.extract_strided_slice %43 {offsets = [0, 0], sizes = [32, 16], strides = [1, 1]} : vector<32x128xf32> to vector<32x16xf32>
    %48 = math.tanh %47 : vector<32x16xf32>
    %c4 = arith.constant 4 : index
    %c0_37 = arith.constant 0 : index
    %c0_38 = arith.constant 0 : index
    %49 = vector.load %arg1[%c4, %c0_37, %c0_38] : memref<9x16x128xf32, #tpu.memory_space<vmem>>, vector<1x16x128xf32>
    %50 = vector.shape_cast %49 : vector<1x16x128xf32> to vector<16x128xf32>
    %cst_39 = arith.constant dense<0.000000e+00> : vector<32x128xf32>
    %51 = tpu.matmul %48, %50, %cst_39 {dimension_numbers = #tpu.dot_dimension_numbers<[1], [0], [0], [1], [0, 0, 1, 1], [], []>} : vector<32x16xf32>, vector<16x128xf32>, vector<32x128xf32> -> vector<32x128xf32>
    %c4_40 = arith.constant 4 : index
    %c0_41 = arith.constant 0 : index
    %c0_42 = arith.constant 0 : index
    %52 = vector.load %arg2[%c4_40, %c0_41, %c0_42] : memref<9x1x128xf32, #tpu.memory_space<vmem>>, vector<1x1x128xf32>
    %53 = vector.shape_cast %52 : vector<1x1x128xf32> to vector<1x128xf32>
    %54 = vector.broadcast %53 : vector<1x128xf32> to vector<32x128xf32>
    %55 = arith.addf %51, %54 : vector<32x128xf32>
    %c4_43 = arith.constant 4 : index
    %c0_44 = arith.constant 0 : index
    %c0_45 = arith.constant 0 : index
    %56 = vector.load %arg3[%c4_43, %c0_44, %c0_45] : memref<8x32x128xf32, #tpu.memory_space<vmem>>, vector<1x32x128xf32>
    %57 = vector.shape_cast %56 : vector<1x32x128xf32> to vector<32x128xf32>
    %58 = vector.shape_cast %55 : vector<32x128xf32> to vector<1x32x128xf32>
    tpu.vector_store %arg3[%c4_43, %c0_44, %c0_45], %58 {strides = array<i32>} : memref<8x32x128xf32, #tpu.memory_space<vmem>>, vector<1x32x128xf32>,
    %59 = vector.extract_strided_slice %55 {offsets = [0, 0], sizes = [32, 16], strides = [1, 1]} : vector<32x128xf32> to vector<32x16xf32>
    %60 = math.tanh %59 : vector<32x16xf32>
    %c5 = arith.constant 5 : index
    %c0_46 = arith.constant 0 : index
    %c0_47 = arith.constant 0 : index
    %61 = vector.load %arg1[%c5, %c0_46, %c0_47] : memref<9x16x128xf32, #tpu.memory_space<vmem>>, vector<1x16x128xf32>
    %62 = vector.shape_cast %61 : vector<1x16x128xf32> to vector<16x128xf32>
    %cst_48 = arith.constant dense<0.000000e+00> : vector<32x128xf32>
    %63 = tpu.matmul %60, %62, %cst_48 {dimension_numbers = #tpu.dot_dimension_numbers<[1], [0], [0], [1], [0, 0, 1, 1], [], []>} : vector<32x16xf32>, vector<16x128xf32>, vector<32x128xf32> -> vector<32x128xf32>
    %c5_49 = arith.constant 5 : index
    %c0_50 = arith.constant 0 : index
    %c0_51 = arith.constant 0 : index
    %64 = vector.load %arg2[%c5_49, %c0_50, %c0_51] : memref<9x1x128xf32, #tpu.memory_space<vmem>>, vector<1x1x128xf32>
    %65 = vector.shape_cast %64 : vector<1x1x128xf32> to vector<1x128xf32>
    %66 = vector.broadcast %65 : vector<1x128xf32> to vector<32x128xf32>
    %67 = arith.addf %63, %66 : vector<32x128xf32>
    %c5_52 = arith.constant 5 : index
    %c0_53 = arith.constant 0 : index
    %c0_54 = arith.constant 0 : index
    %68 = vector.load %arg3[%c5_52, %c0_53, %c0_54] : memref<8x32x128xf32, #tpu.memory_space<vmem>>, vector<1x32x128xf32>
    %69 = vector.shape_cast %68 : vector<1x32x128xf32> to vector<32x128xf32>
    %70 = vector.shape_cast %67 : vector<32x128xf32> to vector<1x32x128xf32>
    tpu.vector_store %arg3[%c5_52, %c0_53, %c0_54], %70 {strides = array<i32>} : memref<8x32x128xf32, #tpu.memory_space<vmem>>, vector<1x32x128xf32>,
    %71 = vector.extract_strided_slice %67 {offsets = [0, 0], sizes = [32, 16], strides = [1, 1]} : vector<32x128xf32> to vector<32x16xf32>
    %72 = math.tanh %71 : vector<32x16xf32>
    %c6 = arith.constant 6 : index
    %c0_55 = arith.constant 0 : index
    %c0_56 = arith.constant 0 : index
    %73 = vector.load %arg1[%c6, %c0_55, %c0_56] : memref<9x16x128xf32, #tpu.memory_space<vmem>>, vector<1x16x128xf32>
    %74 = vector.shape_cast %73 : vector<1x16x128xf32> to vector<16x128xf32>
    %cst_57 = arith.constant dense<0.000000e+00> : vector<32x128xf32>
    %75 = tpu.matmul %72, %74, %cst_57 {dimension_numbers = #tpu.dot_dimension_numbers<[1], [0], [0], [1], [0, 0, 1, 1], [], []>} : vector<32x16xf32>, vector<16x128xf32>, vector<32x128xf32> -> vector<32x128xf32>
    %c6_58 = arith.constant 6 : index
    %c0_59 = arith.constant 0 : index
    %c0_60 = arith.constant 0 : index
    %76 = vector.load %arg2[%c6_58, %c0_59, %c0_60] : memref<9x1x128xf32, #tpu.memory_space<vmem>>, vector<1x1x128xf32>
    %77 = vector.shape_cast %76 : vector<1x1x128xf32> to vector<1x128xf32>
    %78 = vector.broadcast %77 : vector<1x128xf32> to vector<32x128xf32>
    %79 = arith.addf %75, %78 : vector<32x128xf32>
    %c6_61 = arith.constant 6 : index
    %c0_62 = arith.constant 0 : index
    %c0_63 = arith.constant 0 : index
    %80 = vector.load %arg3[%c6_61, %c0_62, %c0_63] : memref<8x32x128xf32, #tpu.memory_space<vmem>>, vector<1x32x128xf32>
    %81 = vector.shape_cast %80 : vector<1x32x128xf32> to vector<32x128xf32>
    %82 = vector.shape_cast %79 : vector<32x128xf32> to vector<1x32x128xf32>
    tpu.vector_store %arg3[%c6_61, %c0_62, %c0_63], %82 {strides = array<i32>} : memref<8x32x128xf32, #tpu.memory_space<vmem>>, vector<1x32x128xf32>,
    %83 = vector.extract_strided_slice %79 {offsets = [0, 0], sizes = [32, 16], strides = [1, 1]} : vector<32x128xf32> to vector<32x16xf32>
    %84 = math.tanh %83 : vector<32x16xf32>
    %c7 = arith.constant 7 : index
    %c0_64 = arith.constant 0 : index
    %c0_65 = arith.constant 0 : index
    %85 = vector.load %arg1[%c7, %c0_64, %c0_65] : memref<9x16x128xf32, #tpu.memory_space<vmem>>, vector<1x16x128xf32>
    %86 = vector.shape_cast %85 : vector<1x16x128xf32> to vector<16x128xf32>
    %cst_66 = arith.constant dense<0.000000e+00> : vector<32x128xf32>
    %87 = tpu.matmul %84, %86, %cst_66 {dimension_numbers = #tpu.dot_dimension_numbers<[1], [0], [0], [1], [0, 0, 1, 1], [], []>} : vector<32x16xf32>, vector<16x128xf32>, vector<32x128xf32> -> vector<32x128xf32>
    %c7_67 = arith.constant 7 : index
    %c0_68 = arith.constant 0 : index
    %c0_69 = arith.constant 0 : index
    %88 = vector.load %arg2[%c7_67, %c0_68, %c0_69] : memref<9x1x128xf32, #tpu.memory_space<vmem>>, vector<1x1x128xf32>
    %89 = vector.shape_cast %88 : vector<1x1x128xf32> to vector<1x128xf32>
    %90 = vector.broadcast %89 : vector<1x128xf32> to vector<32x128xf32>
    %91 = arith.addf %87, %90 : vector<32x128xf32>
    %c7_70 = arith.constant 7 : index
    %c0_71 = arith.constant 0 : index
    %c0_72 = arith.constant 0 : index
    %92 = vector.load %arg3[%c7_70, %c0_71, %c0_72] : memref<8x32x128xf32, #tpu.memory_space<vmem>>, vector<1x32x128xf32>
    %93 = vector.shape_cast %92 : vector<1x32x128xf32> to vector<32x128xf32>
    %94 = vector.shape_cast %91 : vector<32x128xf32> to vector<1x32x128xf32>
    tpu.vector_store %arg3[%c7_70, %c0_71, %c0_72], %94 {strides = array<i32>} : memref<8x32x128xf32, #tpu.memory_space<vmem>>, vector<1x32x128xf32>,
    %95 = vector.extract_strided_slice %91 {offsets = [0, 0], sizes = [32, 16], strides = [1, 1]} : vector<32x128xf32> to vector<32x16xf32>
    %96 = math.tanh %95 : vector<32x16xf32>
    %c8 = arith.constant 8 : index
    %c0_73 = arith.constant 0 : index
    %c0_74 = arith.constant 0 : index
    %97 = vector.load %arg1[%c8, %c0_73, %c0_74] : memref<9x16x128xf32, #tpu.memory_space<vmem>>, vector<1x16x128xf32>
    %98 = vector.shape_cast %97 : vector<1x16x128xf32> to vector<16x128xf32>
    %cst_75 = arith.constant dense<0.000000e+00> : vector<32x128xf32>
    %99 = tpu.matmul %96, %98, %cst_75 {dimension_numbers = #tpu.dot_dimension_numbers<[1], [0], [0], [1], [0, 0, 1, 1], [], []>} : vector<32x16xf32>, vector<16x128xf32>, vector<32x128xf32> -> vector<32x128xf32>
    %c8_76 = arith.constant 8 : index
    %c0_77 = arith.constant 0 : index
    %c0_78 = arith.constant 0 : index
    %100 = vector.load %arg2[%c8_76, %c0_77, %c0_78] : memref<9x1x128xf32, #tpu.memory_space<vmem>>, vector<1x1x128xf32>
    %101 = vector.shape_cast %100 : vector<1x1x128xf32> to vector<1x128xf32>
    %102 = vector.broadcast %101 : vector<1x128xf32> to vector<32x128xf32>
    %103 = arith.addf %99, %102 : vector<32x128xf32>
    %c0_79 = arith.constant 0 : index
    %c0_80 = arith.constant 0 : index
    %104 = vector.load %arg4[%c0_79, %c0_80] : memref<32x128xf32, #tpu.memory_space<vmem>>, vector<32x128xf32>
    tpu.vector_store %arg4[%c0_79, %c0_80], %103 {strides = array<i32>} : memref<32x128xf32, #tpu.memory_space<vmem>>, vector<32x128xf32>,
    return
  }
}

</mosaic_0001>

<llo_original>
// kernel: tpu_custom_call.1
$region0: #{tpu_custom_call.1}
  #allocation0 [shape = 'u32[]', space=smem, size = 0x4, offset = 0x4, fixed_abs, tag = 'smem constant byte address 0x4 - core index']
  #allocation1 [shape = 'u32[144,128]{1,0:T(1,128)}', space=vmem, size = 0x12000, scoped, tag = 'internal scratch']
  %s0 = inlined_call_operand.vmem [shape: f32[32,16], index: 0, kind: input, shape index: {}]
  %s1 = inlined_call_operand.hbm [shape: f32[9,16,128], index: 1, kind: input, shape index: {}]
  %s2 = inlined_call_operand.vmem [shape: f32[9,1,128], index: 2, kind: input, shape index: {}]
  %s3 = inlined_call_operand.hbm [shape: f32[8,32,128], index: 3, kind: output, shape index: {0}]
  %s4 = inlined_call_operand.hbm [shape: f32[32,128], index: 4, kind: output, shape index: {1}]
  %5 = xla_tuple %s3, %s4
  %s6 = sld [smem:[#allocation0]]
  $region34: #{tpu_custom_call.1} parent=0
    _
  %s8 = ssub.s32 1, %s6
  %s9 = scalar_select 0, %s8, %s6
  $region1: #{tpu_custom_call.1} parent=0
    #allocation2 [shape = 'u8[73728]{0}', space=vmem, size = 0x12000, scoped, tag = 'input window, operand 1, single buffered']
    #allocation3 [shape = 's32[1]{0}', space=sflag, size = 0x4, scoped, tag = 'scoped memory for tpu_custom_call.1']
    #allocation4 [shape = 's32[1]{0}', space=sflag, size = 0x4, scoped, tag = 'scoped memory for tpu_custom_call.1']
    #allocation5 [shape = 'u8[131072]{0}', space=vmem, size = 0x20000, scoped, tag = 'output window, operand 0, single buffered']
    #allocation6 [shape = 'u8[16384]{0}', space=vmem, size = 0x4000, scoped, tag = 'output window, operand 1, single buffered']
    #allocation7 [shape = 's32[1]{0}', space=sflag, size = 0x4, scoped, tag = 'scoped memory for tpu_custom_call.1']
    %10 = vsyncpa [#allocation3], 0
    %11 = vsyncpa [#allocation4], 0
    %12 = vsyncpa [#allocation7], 0
    // Predicated region
    $region2: #{tpu_custom_call.1} parent=1 // pred_check
      _
    $region3: #{tpu_custom_call.1} parent=1 // pred_check_branch
      %14 = sbr.rel (0) target = $region5
    $region4: #{tpu_custom_call.1} parent=1 // pred_region
      _
    $region5: #{tpu_custom_call.1} parent=1 // pred_fallthru
      _
    // Predicated region
    $region6: #{tpu_custom_call.1} parent=1 // pred_check
      _
    $region7: #{tpu_custom_call.1} parent=1 // pred_check_branch
      %16 = sbr.rel (0) target = $region9
    $region8: #{tpu_custom_call.1} parent=1 // pred_region
      %s18 = ssub.s32 2304, 2304
      %19 = vsyncadd [#allocation3], %s18
      %s20 = sshll.u32 [#allocation2], 4
      %s21 = int_to_ptr.vmem [resolvable:$true] %s20
      %26 = dma.hbm_to_vmem [thread:$0]  %s1, 2304, %s21, [#allocation3], 128, 128, 8
    $region9: #{tpu_custom_call.1} parent=1 // pred_fallthru
      _
    // Predicated region
    $region10: #{tpu_custom_call.1} parent=1 // pred_check
      _
    $region11: #{tpu_custom_call.1} parent=1 // pred_check_branch
      %28 = sbr.rel (0) target = $region13
    $region12: #{tpu_custom_call.1} parent=1 // pred_region
      _
    $region13: #{tpu_custom_call.1} parent=1 // pred_fallthru
      _
    // Predicated region
    $region14: #{tpu_custom_call.1} parent=1 // pred_check
      _
    $region15: #{tpu_custom_call.1} parent=1 // pred_check_branch
      %30 = sbr.rel (0) target = $region17
    $region16: #{tpu_custom_call.1} parent=1 // pred_region
      %31 = dma.done [#allocation3], 2304
    $region17: #{tpu_custom_call.1} parent=1 // pred_fallthru
      _
    %v32 = vld [vmem:[%s0] sm:$0xff]
    %v33 = vld [vmem:[%s0 + $0x8] sm:$0xff]
    %v34 = vld [vmem:[%s0 + $0x10] sm:$0xff]
    %v35 = vld [vmem:[%s0 + $0x18] sm:$0xff]
    %v36 = vld [vmem:[#allocation2] sm:$0xff]
    %v37 = vld [vmem:[#allocation2 + $0x8] sm:$0xff]
    %v38 = vld [vmem:[%s2] sm:$0x1]
    %v40 = vlaneseq
    %v41 = vshrl.u32 %v40, 7
    %v42 = vsub.s32 0, %v41
    %v43 = vrot.slane %v38, %v42
    %vm45 = vcmask 130048
    %v47 = vsel %vm45, %v32, 0
    %v50 = vsel %vm45, %v33, 0
    %v53 = vsel %vm45, %v34, 0
    %v56 = vsel %vm45, %v35, 0
    %58 = vmatprep.subr.mxu0 0.0
    %59 = vmatpush1.msra.mxu0 0.0
    %60 = vmatprep.subr.mxu0 0.0
    %61 = vmatpush1.msra.mxu0 0.0
    %62 = vmatprep.subr.mxu0 0.0
    %63 = vmatpush1.msra.mxu0 0.0
    %64 = vmatprep.subr.mxu0 0.0
    %65 = vmatpush1.msra.mxu0 0.0
    %66 = vmatprep.subr.mxu0 0.0
    %67 = vmatpush1.msra.mxu0 0.0
    %68 = vmatprep.subr.mxu0 0.0
    %69 = vmatpush1.msra.mxu0 0.0
    %70 = vmatprep.subr.mxu0 0.0
    %71 = vmatpush1.msra.mxu0 0.0
    %72 = vmatprep.subr.mxu0 0.0
    %73 = vmatpush1.msra.mxu0 0.0
    %74 = vmatprep.subr.mxu0 0.0
    %75 = vmatpush1.msra.mxu0 0.0
    %76 = vmatprep.subr.mxu0 0.0
    %77 = vmatpush1.msra.mxu0 0.0
    %78 = vmatprep.subr.mxu0 0.0
    %79 = vmatpush1.msra.mxu0 0.0
    %80 = vmatprep.subr.mxu0 0.0
    %81 = vmatpush1.msra.mxu0 0.0
    %82 = vmatprep.subr.mxu0 0.0
    %83 = vmatpush1.msra.mxu0 0.0
    %84 = vmatprep.subr.mxu0 0.0
    %85 = vmatpush1.msra.mxu0 0.0
    %86 = vmatprep.subr.mxu0 0.0
    %87 = vmatpush1.msra.mxu0 %v37
    %88 = vmatprep.subr.mxu0 0.0
    %89 = vmatpush1.msra.mxu0 %v36
    %90 = vmatprep.subr.mxu0 0.0
    %91 = vmatpush2.msra.mxu0 0.0
    %92 = vmatprep.subr.mxu0 0.0
    %93 = vmatpush2.msra.mxu0 0.0
    %94 = vmatprep.subr.mxu0 0.0
    %95 = vmatpush2.msra.mxu0 0.0
    %96 = vmatprep.subr.mxu0 0.0
    %97 = vmatpush2.msra.mxu0 0.0
    %98 = vmatprep.subr.mxu0 0.0
    %99 = vmatpush2.msra.mxu0 0.0
    %100 = vmatprep.subr.mxu0 0.0
    %101 = vmatpush2.msra.mxu0 0.0
    %102 = vmatprep.subr.mxu0 0.0
    %103 = vmatpush2.msra.mxu0 0.0
    %104 = vmatprep.subr.mxu0 0.0
    %105 = vmatpush2.msra.mxu0 0.0
    %106 = vmatprep.subr.mxu0 0.0
    %107 = vmatpush2.msra.mxu0 0.0
    %108 = vmatprep.subr.mxu0 0.0
    %109 = vmatpush2.msra.mxu0 0.0
    %110 = vmatprep.subr.mxu0 0.0
    %111 = vmatpush2.msra.mxu0 0.0
    %112 = vmatprep.subr.mxu0 0.0
    %113 = vmatpush2.msra.mxu0 0.0
    %114 = vmatprep.subr.mxu0 0.0
    %115 = vmatpush2.msra.mxu0 0.0
    %116 = vmatprep.subr.mxu0 0.0
    %117 = vmatpush2.msra.mxu0 0.0
    %118 = vmatprep.subr.mxu0 0.0
    %119 = vmatpush2.msra.mxu0 0.0
    %120 = vmatprep.subr.mxu0 0.0
    %121 = vmatpush2.msra.mxu0 0.0
    %122 = vmatprep.mubr.f32.mxu0 0.0
    %123 = vmatmul.mubr.f32.gmra.mxu0 %v47
    %v124 = vpop.f32.mrf.mxu0
    %v125 = vadd.f32 %v43, %v124
    %v126 = vpop.f32.mrf.mxu0
    %127 = vmatprep.mubr.f32.mxu0 0.0
    %128 = vmatmul.mubr.f32.gmra.mxu0 %v50
    %v129 = vpop.f32.mrf.mxu0
    %v130 = vadd.f32 %v43, %v129
    %v131 = vpop.f32.mrf.mxu0
    %132 = vmatprep.mubr.f32.mxu0 0.0
    %133 = vmatmul.mubr.f32.gmra.mxu0 %v53
    %v134 = vpop.f32.mrf.mxu0
    %v135 = vadd.f32 %v43, %v134
    %v136 = vpop.f32.mrf.mxu0
    %137 = vmatprep.mubr.f32.mxu0 0.0
    %138 = vmatmul.mubr.f32.gmra.mxu0 %v56
    %v139 = vpop.f32.mrf.mxu0
    %v140 = vadd.f32 %v43, %v139
    %v141 = vpop.f32.mrf.mxu0
    %142 = vdwg.mxu0
    %143 = vst [vmem:[#allocation5] sm:$0xff] %v125
    %144 = vst [vmem:[#allocation5 + $0x8] sm:$0xff] %v130
    %145 = vst [vmem:[#allocation5 + $0x10] sm:$0xff] %v135
    %146 = vst [vmem:[#allocation5 + $0x18] sm:$0xff] %v140
    %v147 = vtanh.pop %v125
    %v148 = vtanh.pop %v130
    %v149 = vtanh.pop %v135
    %v150 = vtanh.pop %v140
    %s151 = scalar_lea.vmem [#allocation2], 16
    %v152 = vld [vmem:[%s151] sm:$0xff]
    %v153 = vld [vmem:[%s151 + $0x8] sm:$0xff]
    %s154 = scalar_lea.vmem %s2, 1
    %v155 = vld [vmem:[%s154] sm:$0x1]
    %v157 = vlaneseq
    %v158 = vshrl.u32 %v157, 7
    %v159 = vsub.s32 0, %v158
    %v160 = vrot.slane %v155, %v159
    %v163 = vsel %vm45, %v147, 0
    %v166 = vsel %vm45, %v148, 0
    %v169 = vsel %vm45, %v149, 0
    %v172 = vsel %vm45, %v150, 0
    %174 = vmatprep.subr.mxu0 0.0
    %175 = vmatpush1.msra.mxu0 0.0
    %176 = vmatprep.subr.mxu0 0.0
    %177 = vmatpush1.msra.mxu0 0.0
    %178 = vmatprep.subr.mxu0 0.0
    %179 = vmatpush1.msra.mxu0 0.0
    %180 = vmatprep.subr.mxu0 0.0
    %181 = vmatpush1.msra.mxu0 0.0
    %182 = vmatprep.subr.mxu0 0.0
    %183 = vmatpush1.msra.mxu0 0.0
    %184 = vmatprep.subr.mxu0 0.0
    %185 = vmatpush1.msra.mxu0 0.0
    %186 = vmatprep.subr.mxu0 0.0
    %187 = vmatpush1.msra.mxu0 0.0
    %188 = vmatprep.subr.mxu0 0.0
    %189 = vmatpush1.msra.mxu0 0.0
    %190 = vmatprep.subr.mxu0 0.0
    %191 = vmatpush1.msra.mxu0 0.0
    %192 = vmatprep.subr.mxu0 0.0
    %193 = vmatpush1.msra.mxu0 0.0
    %194 = vmatprep.subr.mxu0 0.0
    %195 = vmatpush1.msra.mxu0 0.0
    %196 = vmatprep.subr.mxu0 0.0
    %197 = vmatpush1.msra.mxu0 0.0
    %198 = vmatprep.subr.mxu0 0.0
    %199 = vmatpush1.msra.mxu0 0.0
    %200 = vmatprep.subr.mxu0 0.0
    %201 = vmatpush1.msra.mxu0 0.0
    %202 = vmatprep.subr.mxu0 0.0
    %203 = vmatpush1.msra.mxu0 %v153
    %204 = vmatprep.subr.mxu0 0.0
    %205 = vmatpush1.msra.mxu0 %v152
    %206 = vmatprep.subr.mxu0 0.0
    %207 = vmatpush2.msra.mxu0 0.0
    %208 = vmatprep.subr.mxu0 0.0
    %209 = vmatpush2.msra.mxu0 0.0
    %210 = vmatprep.subr.mxu0 0.0
    %211 = vmatpush2.msra.mxu0 0.0
    %212 = vmatprep.subr.mxu0 0.0
    %213 = vmatpush2.msra.mxu0 0.0
    %214 = vmatprep.subr.mxu0 0.0
    %215 = vmatpush2.msra.mxu0 0.0
    %216 = vmatprep.subr.mxu0 0.0
    %217 = vmatpush2.msra.mxu0 0.0
    %218 = vmatprep.subr.mxu0 0.0
    %219 = vmatpush2.msra.mxu0 0.0
    %220 = vmatprep.subr.mxu0 0.0
    %221 = vmatpush2.msra.mxu0 0.0
    %222 = vmatprep.subr.mxu0 0.0
    %223 = vmatpush2.msra.mxu0 0.0
    %224 = vmatprep.subr.mxu0 0.0
    %225 = vmatpush2.msra.mxu0 0.0
    %226 = vmatprep.subr.mxu0 0.0
    %227 = vmatpush2.msra.mxu0 0.0
    %228 = vmatprep.subr.mxu0 0.0
    %229 = vmatpush2.msra.mxu0 0.0
    %230 = vmatprep.subr.mxu0 0.0
    %231 = vmatpush2.msra.mxu0 0.0
    %232 = vmatprep.subr.mxu0 0.0
    %233 = vmatpush2.msra.mxu0 0.0
    %234 = vmatprep.subr.mxu0 0.0
    %235 = vmatpush2.msra.mxu0 0.0
    %236 = vmatprep.subr.mxu0 0.0
    %237 = vmatpush2.msra.mxu0 0.0
    %238 = vmatprep.mubr.f32.mxu0 0.0
    %239 = vmatmul.mubr.f32.gmra.mxu0 %v163
    %v240 = vpop.f32.mrf.mxu0
    %v241 = vadd.f32 %v160, %v240
    %v242 = vpop.f32.mrf.mxu0
    %243 = vmatprep.mubr.f32.mxu0 0.0
    %244 = vmatmul.mubr.f32.gmra.mxu0 %v166
    %v245 = vpop.f32.mrf.mxu0
    %v246 = vadd.f32 %v160, %v245
    %v247 = vpop.f32.mrf.mxu0
    %248 = vmatprep.mubr.f32.mxu0 0.0
    %249 = vmatmul.mubr.f32.gmra.mxu0 %v169
    %v250 = vpop.f32.mrf.mxu0
    %v251 = vadd.f32 %v160, %v250
    %v252 = vpop.f32.mrf.mxu0
    %253 = vmatprep.mubr.f32.mxu0 0.0
    %254 = vmatmul.mubr.f32.gmra.mxu0 %v172
    %v255 = vpop.f32.mrf.mxu0
    %v256 = vadd.f32 %v160, %v255
    %v257 = vpop.f32.mrf.mxu0
    %258 = vdwg.mxu0
    %s259 = scalar_lea.vmem [#allocation5], 32
    %260 = vst [vmem:[%s259] sm:$0xff] %v241
    %261 = vst [vmem:[%s259 + $0x8] sm:$0xff] %v246
    %262 = vst [vmem:[%s259 + $0x10] sm:$0xff] %v251
    %263 = vst [vmem:[%s259 + $0x18] sm:$0xff] %v256
    %v264 = vtanh.pop %v241
    %v265 = vtanh.pop %v246
    %v266 = vtanh.pop %v251
    %v267 = vtanh.pop %v256
    %s268 = scalar_lea.vmem [#allocation2], 32
    %v269 = vld [vmem:[%s268] sm:$0xff]
    %v270 = vld [vmem:[%s268 + $0x8] sm:$0xff]
    %s271 = scalar_lea.vmem %s2, 2
    %v272 = vld [vmem:[%s271] sm:$0x1]
    %v274 = vlaneseq
    %v275 = vshrl.u32 %v274, 7
    %v276 = vsub.s32 0, %v275
    %v277 = vrot.slane %v272, %v276
    %v280 = vsel %vm45, %v264, 0
    %v283 = vsel %vm45, %v265, 0
    %v286 = vsel %vm45, %v266, 0
    %v289 = vsel %vm45, %v267, 0
    %291 = vmatprep.subr.mxu0 0.0
    %292 = vmatpush1.msra.mxu0 0.0
    %293 = vmatprep.subr.mxu0 0.0
    %294 = vmatpush1.msra.mxu0 0.0
    %295 = vmatprep.subr.mxu0 0.0
    %296 = vmatpush1.msra.mxu0 0.0
    %297 = vmatprep.subr.mxu0 0.0
    %298 = vmatpush1.msra.mxu0 0.0
    %299 = vmatprep.subr.mxu0 0.0
    %300 = vmatpush1.msra.mxu0 0.0
    %301 = vmatprep.subr.mxu0 0.0
    %302 = vmatpush1.msra.mxu0 0.0
    %303 = vmatprep.subr.mxu0 0.0
    %304 = vmatpush1.msra.mxu0 0.0
    %305 = vmatprep.subr.mxu0 0.0
    %306 = vmatpush1.msra.mxu0 0.0
    %307 = vmatprep.subr.mxu0 0.0
    %308 = vmatpush1.msra.mxu0 0.0
    %309 = vmatprep.subr.mxu0 0.0
    %310 = vmatpush1.msra.mxu0 0.0
    %311 = vmatprep.subr.mxu0 0.0
    %312 = vmatpush1.msra.mxu0 0.0
    %313 = vmatprep.subr.mxu0 0.0
    %314 = vmatpush1.msra.mxu0 0.0
    %315 = vmatprep.subr.mxu0 0.0
    %316 = vmatpush1.msra.mxu0 0.0
    %317 = vmatprep.subr.mxu0 0.0
    %318 = vmatpush1.msra.mxu0 0.0
    %319 = vmatprep.subr.mxu0 0.0
    %320 = vmatpush1.msra.mxu0 %v270
    %321 = vmatprep.subr.mxu0 0.0
    %322 = vmatpush1.msra.mxu0 %v269
    %323 = vmatprep.subr.mxu0 0.0
    %324 = vmatpush2.msra.mxu0 0.0
    %325 = vmatprep.subr.mxu0 0.0
    %326 = vmatpush2.msra.mxu0 0.0
    %327 = vmatprep.subr.mxu0 0.0
    %328 = vmatpush2.msra.mxu0 0.0
    %329 = vmatprep.subr.mxu0 0.0
    %330 = vmatpush2.msra.mxu0 0.0
    %331 = vmatprep.subr.mxu0 0.0
    %332 = vmatpush2.msra.mxu0 0.0
    %333 = vmatprep.subr.mxu0 0.0
    %334 = vmatpush2.msra.mxu0 0.0
    %335 = vmatprep.subr.mxu0 0.0
    %336 = vmatpush2.msra.mxu0 0.0
    %337 = vmatprep.subr.mxu0 0.0
    %338 = vmatpush2.msra.mxu0 0.0
    %339 = vmatprep.subr.mxu0 0.0
    %340 = vmatpush2.msra.mxu0 0.0
    %341 = vmatprep.subr.mxu0 0.0
    %342 = vmatpush2.msra.mxu0 0.0
    %343 = vmatprep.subr.mxu0 0.0
    %344 = vmatpush2.msra.mxu0 0.0
    %345 = vmatprep.subr.mxu0 0.0
    %346 = vmatpush2.msra.mxu0 0.0
    %347 = vmatprep.subr.mxu0 0.0
    %348 = vmatpush2.msra.mxu0 0.0
    %349 = vmatprep.subr.mxu0 0.0
    %350 = vmatpush2.msra.mxu0 0.0
    %351 = vmatprep.subr.mxu0 0.0
    %352 = vmatpush2.msra.mxu0 0.0
    %353 = vmatprep.subr.mxu0 0.0
    %354 = vmatpush2.msra.mxu0 0.0
    %355 = vmatprep.mubr.f32.mxu0 0.0
    %356 = vmatmul.mubr.f32.gmra.mxu0 %v280
    %v357 = vpop.f32.mrf.mxu0
    %v358 = vadd.f32 %v277, %v357
    %v359 = vpop.f32.mrf.mxu0
    %360 = vmatprep.mubr.f32.mxu0 0.0
    %361 = vmatmul.mubr.f32.gmra.mxu0 %v283
    %v362 = vpop.f32.mrf.mxu0
    %v363 = vadd.f32 %v277, %v362
    %v364 = vpop.f32.mrf.mxu0
    %365 = vmatprep.mubr.f32.mxu0 0.0
    %366 = vmatmul.mubr.f32.gmra.mxu0 %v286
    %v367 = vpop.f32.mrf.mxu0
    %v368 = vadd.f32 %v277, %v367
    %v369 = vpop.f32.mrf.mxu0
    %370 = vmatprep.mubr.f32.mxu0 0.0
    %371 = vmatmul.mubr.f32.gmra.mxu0 %v289
    %v372 = vpop.f32.mrf.mxu0
    %v373 = vadd.f32 %v277, %v372
    %v374 = vpop.f32.mrf.mxu0
    %375 = vdwg.mxu0
    %s376 = scalar_lea.vmem [#allocation5], 64
    %377 = vst [vmem:[%s376] sm:$0xff] %v358
    %378 = vst [vmem:[%s376 + $0x8] sm:$0xff] %v363
    %379 = vst [vmem:[%s376 + $0x10] sm:$0xff] %v368
    %380 = vst [vmem:[%s376 + $0x18] sm:$0xff] %v373
    %v381 = vtanh.pop %v358
    %v382 = vtanh.pop %v363
    %v383 = vtanh.pop %v368
    %v384 = vtanh.pop %v373
    %s385 = scalar_lea.vmem [#allocation2], 48
    %v386 = vld [vmem:[%s385] sm:$0xff]
    %v387 = vld [vmem:[%s385 + $0x8] sm:$0xff]
    %s388 = scalar_lea.vmem %s2, 3
    %v389 = vld [vmem:[%s388] sm:$0x1]
    %v391 = vlaneseq
    %v392 = vshrl.u32 %v391, 7
    %v393 = vsub.s32 0, %v392
    %v394 = vrot.slane %v389, %v393
    %v397 = vsel %vm45, %v381, 0
    %v400 = vsel %vm45, %v382, 0
    %v403 = vsel %vm45, %v383, 0
    %v406 = vsel %vm45, %v384, 0
    %408 = vmatprep.subr.mxu0 0.0
    %409 = vmatpush1.msra.mxu0 0.0
    %410 = vmatprep.subr.mxu0 0.0
    %411 = vmatpush1.msra.mxu0 0.0
    %412 = vmatprep.subr.mxu0 0.0
    %413 = vmatpush1.msra.mxu0 0.0
    %414 = vmatprep.subr.mxu0 0.0
    %415 = vmatpush1.msra.mxu0 0.0
    %416 = vmatprep.subr.mxu0 0.0
    %417 = vmatpush1.msra.mxu0 0.0
    %418 = vmatprep.subr.mxu0 0.0
    %419 = vmatpush1.msra.mxu0 0.0
    %420 = vmatprep.subr.mxu0 0.0
    %421 = vmatpush1.msra.mxu0 0.0
    %422 = vmatprep.subr.mxu0 0.0
    %423 = vmatpush1.msra.mxu0 0.0
    %424 = vmatprep.subr.mxu0 0.0
    %425 = vmatpush1.msra.mxu0 0.0
    %426 = vmatprep.subr.mxu0 0.0
    %427 = vmatpush1.msra.mxu0 0.0
    %428 = vmatprep.subr.mxu0 0.0
    %429 = vmatpush1.msra.mxu0 0.0
    %430 = vmatprep.subr.mxu0 0.0
    %431 = vmatpush1.msra.mxu0 0.0
    %432 = vmatprep.subr.mxu0 0.0
    %433 = vmatpush1.msra.mxu0 0.0
    %434 = vmatprep.subr.mxu0 0.0
    %435 = vmatpush1.msra.mxu0 0.0
    %436 = vmatprep.subr.mxu0 0.0
    %437 = vmatpush1.msra.mxu0 %v387
    %438 = vmatprep.subr.mxu0 0.0
    %439 = vmatpush1.msra.mxu0 %v386
    %440 = vmatprep.subr.mxu0 0.0
    %441 = vmatpush2.msra.mxu0 0.0
    %442 = vmatprep.subr.mxu0 0.0
    %443 = vmatpush2.msra.mxu0 0.0
    %444 = vmatprep.subr.mxu0 0.0
    %445 = vmatpush2.msra.mxu0 0.0
    %446 = vmatprep.subr.mxu0 0.0
    %447 = vmatpush2.msra.mxu0 0.0
    %448 = vmatprep.subr.mxu0 0.0
    %449 = vmatpush2.msra.mxu0 0.0
    %450 = vmatprep.subr.mxu0 0.0
    %451 = vmatpush2.msra.mxu0 0.0
    %452 = vmatprep.subr.mxu0 0.0
    %453 = vmatpush2.msra.mxu0 0.0
    %454 = vmatprep.subr.mxu0 0.0
    %455 = vmatpush2.msra.mxu0 0.0
    %456 = vmatprep.subr.mxu0 0.0
    %457 = vmatpush2.msra.mxu0 0.0
    %458 = vmatprep.subr.mxu0 0.0
    %459 = vmatpush2.msra.mxu0 0.0
    %460 = vmatprep.subr.mxu0 0.0
    %461 = vmatpush2.msra.mxu0 0.0
    %462 = vmatprep.subr.mxu0 0.0
    %463 = vmatpush2.msra.mxu0 0.0
    %464 = vmatprep.subr.mxu0 0.0
    %465 = vmatpush2.msra.mxu0 0.0
    %466 = vmatprep.subr.mxu0 0.0
    %467 = vmatpush2.msra.mxu0 0.0
    %468 = vmatprep.subr.mxu0 0.0
    %469 = vmatpush2.msra.mxu0 0.0
    %470 = vmatprep.subr.mxu0 0.0
    %471 = vmatpush2.msra.mxu0 0.0
    %472 = vmatprep.mubr.f32.mxu0 0.0
    %473 = vmatmul.mubr.f32.gmra.mxu0 %v397
    %v474 = vpop.f32.mrf.mxu0
    %v475 = vadd.f32 %v394, %v474
    %v476 = vpop.f32.mrf.mxu0
    %477 = vmatprep.mubr.f32.mxu0 0.0
    %478 = vmatmul.mubr.f32.gmra.mxu0 %v400
    %v479 = vpop.f32.mrf.mxu0
    %v480 = vadd.f32 %v394, %v479
    %v481 = vpop.f32.mrf.mxu0
    %482 = vmatprep.mubr.f32.mxu0 0.0
    %483 = vmatmul.mubr.f32.gmra.mxu0 %v403
    %v484 = vpop.f32.mrf.mxu0
    %v485 = vadd.f32 %v394, %v484
    %v486 = vpop.f32.mrf.mxu0
    %487 = vmatprep.mubr.f32.mxu0 0.0
    %488 = vmatmul.mubr.f32.gmra.mxu0 %v406
    %v489 = vpop.f32.mrf.mxu0
    %v490 = vadd.f32 %v394, %v489
    %v491 = vpop.f32.mrf.mxu0
    %492 = vdwg.mxu0
    %s493 = scalar_lea.vmem [#allocation5], 96
    %494 = vst [vmem:[%s493] sm:$0xff] %v475
    %495 = vst [vmem:[%s493 + $0x8] sm:$0xff] %v480
    %496 = vst [vmem:[%s493 + $0x10] sm:$0xff] %v485
    %497 = vst [vmem:[%s493 + $0x18] sm:$0xff] %v490
    %v498 = vtanh.pop %v475
    %v499 = vtanh.pop %v480
    %v500 = vtanh.pop %v485
    %v501 = vtanh.pop %v490
    %s502 = scalar_lea.vmem [#allocation2], 64
    %v503 = vld [vmem:[%s502] sm:$0xff]
    %v504 = vld [vmem:[%s502 + $0x8] sm:$0xff]
    %s505 = scalar_lea.vmem %s2, 4
    %v506 = vld [vmem:[%s505] sm:$0x1]
    %v508 = vlaneseq
    %v509 = vshrl.u32 %v508, 7
    %v510 = vsub.s32 0, %v509
    %v511 = vrot.slane %v506, %v510
    %v514 = vsel %vm45, %v498, 0
    %v517 = vsel %vm45, %v499, 0
    %v520 = vsel %vm45, %v500, 0
    %v523 = vsel %vm45, %v501, 0
    %525 = vmatprep.subr.mxu0 0.0
    %526 = vmatpush1.msra.mxu0 0.0
    %527 = vmatprep.subr.mxu0 0.0
    %528 = vmatpush1.msra.mxu0 0.0
    %529 = vmatprep.subr.mxu0 0.0
    %530 = vmatpush1.msra.mxu0 0.0
    %531 = vmatprep.subr.mxu0 0.0
    %532 = vmatpush1.msra.mxu0 0.0
    %533 = vmatprep.subr.mxu0 0.0
    %534 = vmatpush1.msra.mxu0 0.0
    %535 = vmatprep.subr.mxu0 0.0
    %536 = vmatpush1.msra.mxu0 0.0
    %537 = vmatprep.subr.mxu0 0.0
    %538 = vmatpush1.msra.mxu0 0.0
    %539 = vmatprep.subr.mxu0 0.0
    %540 = vmatpush1.msra.mxu0 0.0
    %541 = vmatprep.subr.mxu0 0.0
    %542 = vmatpush1.msra.mxu0 0.0
    %543 = vmatprep.subr.mxu0 0.0
    %544 = vmatpush1.msra.mxu0 0.0
    %545 = vmatprep.subr.mxu0 0.0
    %546 = vmatpush1.msra.mxu0 0.0
    %547 = vmatprep.subr.mxu0 0.0
    %548 = vmatpush1.msra.mxu0 0.0
    %549 = vmatprep.subr.mxu0 0.0
    %550 = vmatpush1.msra.mxu0 0.0
    %551 = vmatprep.subr.mxu0 0.0
    %552 = vmatpush1.msra.mxu0 0.0
    %553 = vmatprep.subr.mxu0 0.0
    %554 = vmatpush1.msra.mxu0 %v504
    %555 = vmatprep.subr.mxu0 0.0
    %556 = vmatpush1.msra.mxu0 %v503
    %557 = vmatprep.subr.mxu0 0.0
    %558 = vmatpush2.msra.mxu0 0.0
    %559 = vmatprep.subr.mxu0 0.0
    %560 = vmatpush2.msra.mxu0 0.0
    %561 = vmatprep.subr.mxu0 0.0
    %562 = vmatpush2.msra.mxu0 0.0
    %563 = vmatprep.subr.mxu0 0.0
    %564 = vmatpush2.msra.mxu0 0.0
    %565 = vmatprep.subr.mxu0 0.0
    %566 = vmatpush2.msra.mxu0 0.0
    %567 = vmatprep.subr.mxu0 0.0
    %568 = vmatpush2.msra.mxu0 0.0
    %569 = vmatprep.subr.mxu0 0.0
    %570 = vmatpush2.msra.mxu0 0.0
    %571 = vmatprep.subr.mxu0 0.0
    %572 = vmatpush2.msra.mxu0 0.0
    %573 = vmatprep.subr.mxu0 0.0
    %574 = vmatpush2.msra.mxu0 0.0
    %575 = vmatprep.subr.mxu0 0.0
    %576 = vmatpush2.msra.mxu0 0.0
    %577 = vmatprep.subr.mxu0 0.0
    %578 = vmatpush2.msra.mxu0 0.0
    %579 = vmatprep.subr.mxu0 0.0
    %580 = vmatpush2.msra.mxu0 0.0
    %581 = vmatprep.subr.mxu0 0.0
    %582 = vmatpush2.msra.mxu0 0.0
    %583 = vmatprep.subr.mxu0 0.0
    %584 = vmatpush2.msra.mxu0 0.0
    %585 = vmatprep.subr.mxu0 0.0
    %586 = vmatpush2.msra.mxu0 0.0
    %587 = vmatprep.subr.mxu0 0.0
    %588 = vmatpush2.msra.mxu0 0.0
    %589 = vmatprep.mubr.f32.mxu0 0.0
    %590 = vmatmul.mubr.f32.gmra.mxu0 %v514
    %v591 = vpop.f32.mrf.mxu0
    %v592 = vadd.f32 %v511, %v591
    %v593 = vpop.f32.mrf.mxu0
    %594 = vmatprep.mubr.f32.mxu0 0.0
    %595 = vmatmul.mubr.f32.gmra.mxu0 %v517
    %v596 = vpop.f32.mrf.mxu0
    %v597 = vadd.f32 %v511, %v596
    %v598 = vpop.f32.mrf.mxu0
    %599 = vmatprep.mubr.f32.mxu0 0.0
    %600 = vmatmul.mubr.f32.gmra.mxu0 %v520
    %v601 = vpop.f32.mrf.mxu0
    %v602 = vadd.f32 %v511, %v601
    %v603 = vpop.f32.mrf.mxu0
    %604 = vmatprep.mubr.f32.mxu0 0.0
    %605 = vmatmul.mubr.f32.gmra.mxu0 %v523
    %v606 = vpop.f32.mrf.mxu0
    %v607 = vadd.f32 %v511, %v606
    %v608 = vpop.f32.mrf.mxu0
    %609 = vdwg.mxu0
    %s610 = scalar_lea.vmem [#allocation5], 128
    %611 = vst [vmem:[%s610] sm:$0xff] %v592
    %612 = vst [vmem:[%s610 + $0x8] sm:$0xff] %v597
    %613 = vst [vmem:[%s610 + $0x10] sm:$0xff] %v602
    %614 = vst [vmem:[%s610 + $0x18] sm:$0xff] %v607
    %v615 = vtanh.pop %v592
    %v616 = vtanh.pop %v597
    %v617 = vtanh.pop %v602
    %v618 = vtanh.pop %v607
    %s619 = scalar_lea.vmem [#allocation2], 80
    %v620 = vld [vmem:[%s619] sm:$0xff]
    %v621 = vld [vmem:[%s619 + $0x8] sm:$0xff]
    %s622 = scalar_lea.vmem %s2, 5
    %v623 = vld [vmem:[%s622] sm:$0x1]
    %v625 = vlaneseq
    %v626 = vshrl.u32 %v625, 7
    %v627 = vsub.s32 0, %v626
    %v628 = vrot.slane %v623, %v627
    %v631 = vsel %vm45, %v615, 0
    %v634 = vsel %vm45, %v616, 0
    %v637 = vsel %vm45, %v617, 0
    %v640 = vsel %vm45, %v618, 0
    %642 = vmatprep.subr.mxu0 0.0
    %643 = vmatpush1.msra.mxu0 0.0
    %644 = vmatprep.subr.mxu0 0.0
    %645 = vmatpush1.msra.mxu0 0.0
    %646 = vmatprep.subr.mxu0 0.0
    %647 = vmatpush1.msra.mxu0 0.0
    %648 = vmatprep.subr.mxu0 0.0
    %649 = vmatpush1.msra.mxu0 0.0
    %650 = vmatprep.subr.mxu0 0.0
    %651 = vmatpush1.msra.mxu0 0.0
    %652 = vmatprep.subr.mxu0 0.0
    %653 = vmatpush1.msra.mxu0 0.0
    %654 = vmatprep.subr.mxu0 0.0
    %655 = vmatpush1.msra.mxu0 0.0
    %656 = vmatprep.subr.mxu0 0.0
    %657 = vmatpush1.msra.mxu0 0.0
    %658 = vmatprep.subr.mxu0 0.0
    %659 = vmatpush1.msra.mxu0 0.0
    %660 = vmatprep.subr.mxu0 0.0
    %661 = vmatpush1.msra.mxu0 0.0
    %662 = vmatprep.subr.mxu0 0.0
    %663 = vmatpush1.msra.mxu0 0.0
    %664 = vmatprep.subr.mxu0 0.0
    %665 = vmatpush1.msra.mxu0 0.0
    %666 = vmatprep.subr.mxu0 0.0
    %667 = vmatpush1.msra.mxu0 0.0
    %668 = vmatprep.subr.mxu0 0.0
    %669 = vmatpush1.msra.mxu0 0.0
    %670 = vmatprep.subr.mxu0 0.0
    %671 = vmatpush1.msra.mxu0 %v621
    %672 = vmatprep.subr.mxu0 0.0
    %673 = vmatpush1.msra.mxu0 %v620
    %674 = vmatprep.subr.mxu0 0.0
    %675 = vmatpush2.msra.mxu0 0.0
    %676 = vmatprep.subr.mxu0 0.0
    %677 = vmatpush2.msra.mxu0 0.0
    %678 = vmatprep.subr.mxu0 0.0
    %679 = vmatpush2.msra.mxu0 0.0
    %680 = vmatprep.subr.mxu0 0.0
    %681 = vmatpush2.msra.mxu0 0.0
    %682 = vmatprep.subr.mxu0 0.0
    %683 = vmatpush2.msra.mxu0 0.0
    %684 = vmatprep.subr.mxu0 0.0
    %685 = vmatpush2.msra.mxu0 0.0
    %686 = vmatprep.subr.mxu0 0.0
    %687 = vmatpush2.msra.mxu0 0.0
    %688 = vmatprep.subr.mxu0 0.0
    %689 = vmatpush2.msra.mxu0 0.0
    %690 = vmatprep.subr.mxu0 0.0
    %691 = vmatpush2.msra.mxu0 0.0
    %692 = vmatprep.subr.mxu0 0.0
    %693 = vmatpush2.msra.mxu0 0.0
    %694 = vmatprep.subr.mxu0 0.0
    %695 = vmatpush2.msra.mxu0 0.0
    %696 = vmatprep.subr.mxu0 0.0
    %697 = vmatpush2.msra.mxu0 0.0
    %698 = vmatprep.subr.mxu0 0.0
    %699 = vmatpush2.msra.mxu0 0.0
    %700 = vmatprep.subr.mxu0 0.0
    %701 = vmatpush2.msra.mxu0 0.0
    %702 = vmatprep.subr.mxu0 0.0
    %703 = vmatpush2.msra.mxu0 0.0
    %704 = vmatprep.subr.mxu0 0.0
    %705 = vmatpush2.msra.mxu0 0.0
    %706 = vmatprep.mubr.f32.mxu0 0.0
    %707 = vmatmul.mubr.f32.gmra.mxu0 %v631
    %v708 = vpop.f32.mrf.mxu0
    %v709 = vadd.f32 %v628, %v708
    %v710 = vpop.f32.mrf.mxu0
    %711 = vmatprep.mubr.f32.mxu0 0.0
    %712 = vmatmul.mubr.f32.gmra.mxu0 %v634
    %v713 = vpop.f32.mrf.mxu0
    %v714 = vadd.f32 %v628, %v713
    %v715 = vpop.f32.mrf.mxu0
    %716 = vmatprep.mubr.f32.mxu0 0.0
    %717 = vmatmul.mubr.f32.gmra.mxu0 %v637
    %v718 = vpop.f32.mrf.mxu0
    %v719 = vadd.f32 %v628, %v718
    %v720 = vpop.f32.mrf.mxu0
    %721 = vmatprep.mubr.f32.mxu0 0.0
    %722 = vmatmul.mubr.f32.gmra.mxu0 %v640
    %v723 = vpop.f32.mrf.mxu0
    %v724 = vadd.f32 %v628, %v723
    %v725 = vpop.f32.mrf.mxu0
    %726 = vdwg.mxu0
    %s727 = scalar_lea.vmem [#allocation5], 160
    %728 = vst [vmem:[%s727] sm:$0xff] %v709
    %729 = vst [vmem:[%s727 + $0x8] sm:$0xff] %v714
    %730 = vst [vmem:[%s727 + $0x10] sm:$0xff] %v719
    %731 = vst [vmem:[%s727 + $0x18] sm:$0xff] %v724
    %v732 = vtanh.pop %v709
    %v733 = vtanh.pop %v714
    %v734 = vtanh.pop %v719
    %v735 = vtanh.pop %v724
    %s736 = scalar_lea.vmem [#allocation2], 96
    %v737 = vld [vmem:[%s736] sm:$0xff]
    %v738 = vld [vmem:[%s736 + $0x8] sm:$0xff]
    %s739 = scalar_lea.vmem %s2, 6
    %v740 = vld [vmem:[%s739] sm:$0x1]
    %v742 = vlaneseq
    %v743 = vshrl.u32 %v742, 7
    %v744 = vsub.s32 0, %v743
    %v745 = vrot.slane %v740, %v744
    %v748 = vsel %vm45, %v732, 0
    %v751 = vsel %vm45, %v733, 0
    %v754 = vsel %vm45, %v734, 0
    %v757 = vsel %vm45, %v735, 0
    %759 = vmatprep.subr.mxu0 0.0
    %760 = vmatpush1.msra.mxu0 0.0
    %761 = vmatprep.subr.mxu0 0.0
    %762 = vmatpush1.msra.mxu0 0.0
    %763 = vmatprep.subr.mxu0 0.0
    %764 = vmatpush1.msra.mxu0 0.0
    %765 = vmatprep.subr.mxu0 0.0
    %766 = vmatpush1.msra.mxu0 0.0
    %767 = vmatprep.subr.mxu0 0.0
    %768 = vmatpush1.msra.mxu0 0.0
    %769 = vmatprep.subr.mxu0 0.0
    %770 = vmatpush1.msra.mxu0 0.0
    %771 = vmatprep.subr.mxu0 0.0
    %772 = vmatpush1.msra.mxu0 0.0
    %773 = vmatprep.subr.mxu0 0.0
    %774 = vmatpush1.msra.mxu0 0.0
    %775 = vmatprep.subr.mxu0 0.0
    %776 = vmatpush1.msra.mxu0 0.0
    %777 = vmatprep.subr.mxu0 0.0
    %778 = vmatpush1.msra.mxu0 0.0
    %779 = vmatprep.subr.mxu0 0.0
    %780 = vmatpush1.msra.mxu0 0.0
    %781 = vmatprep.subr.mxu0 0.0
    %782 = vmatpush1.msra.mxu0 0.0
    %783 = vmatprep.subr.mxu0 0.0
    %784 = vmatpush1.msra.mxu0 0.0
    %785 = vmatprep.subr.mxu0 0.0
    %786 = vmatpush1.msra.mxu0 0.0
    %787 = vmatprep.subr.mxu0 0.0
    %788 = vmatpush1.msra.mxu0 %v738
    %789 = vmatprep.subr.mxu0 0.0
    %790 = vmatpush1.msra.mxu0 %v737
    %791 = vmatprep.subr.mxu0 0.0
    %792 = vmatpush2.msra.mxu0 0.0
    %793 = vmatprep.subr.mxu0 0.0
    %794 = vmatpush2.msra.mxu0 0.0
    %795 = vmatprep.subr.mxu0 0.0
    %796 = vmatpush2.msra.mxu0 0.0
    %797 = vmatprep.subr.mxu0 0.0
    %798 = vmatpush2.msra.mxu0 0.0
    %799 = vmatprep.subr.mxu0 0.0
    %800 = vmatpush2.msra.mxu0 0.0
    %801 = vmatprep.subr.mxu0 0.0
    %802 = vmatpush2.msra.mxu0 0.0
    %803 = vmatprep.subr.mxu0 0.0
    %804 = vmatpush2.msra.mxu0 0.0
    %805 = vmatprep.subr.mxu0 0.0
    %806 = vmatpush2.msra.mxu0 0.0
    %807 = vmatprep.subr.mxu0 0.0
    %808 = vmatpush2.msra.mxu0 0.0
    %809 = vmatprep.subr.mxu0 0.0
    %810 = vmatpush2.msra.mxu0 0.0
    %811 = vmatprep.subr.mxu0 0.0
    %812 = vmatpush2.msra.mxu0 0.0
    %813 = vmatprep.subr.mxu0 0.0
    %814 = vmatpush2.msra.mxu0 0.0
    %815 = vmatprep.subr.mxu0 0.0
    %816 = vmatpush2.msra.mxu0 0.0
    %817 = vmatprep.subr.mxu0 0.0
    %818 = vmatpush2.msra.mxu0 0.0
    %819 = vmatprep.subr.mxu0 0.0
    %820 = vmatpush2.msra.mxu0 0.0
    %821 = vmatprep.subr.mxu0 0.0
    %822 = vmatpush2.msra.mxu0 0.0
    %823 = vmatprep.mubr.f32.mxu0 0.0
    %824 = vmatmul.mubr.f32.gmra.mxu0 %v748
    %v825 = vpop.f32.mrf.mxu0
    %v826 = vadd.f32 %v745, %v825
    %v827 = vpop.f32.mrf.mxu0
    %828 = vmatprep.mubr.f32.mxu0 0.0
    %829 = vmatmul.mubr.f32.gmra.mxu0 %v751
    %v830 = vpop.f32.mrf.mxu0
    %v831 = vadd.f32 %v745, %v830
    %v832 = vpop.f32.mrf.mxu0
    %833 = vmatprep.mubr.f32.mxu0 0.0
    %834 = vmatmul.mubr.f32.gmra.mxu0 %v754
    %v835 = vpop.f32.mrf.mxu0
    %v836 = vadd.f32 %v745, %v835
    %v837 = vpop.f32.mrf.mxu0
    %838 = vmatprep.mubr.f32.mxu0 0.0
    %839 = vmatmul.mubr.f32.gmra.mxu0 %v757
    %v840 = vpop.f32.mrf.mxu0
    %v841 = vadd.f32 %v745, %v840
    %v842 = vpop.f32.mrf.mxu0
    %843 = vdwg.mxu0
    %s844 = scalar_lea.vmem [#allocation5], 192
    %845 = vst [vmem:[%s844] sm:$0xff] %v826
    %846 = vst [vmem:[%s844 + $0x8] sm:$0xff] %v831
    %847 = vst [vmem:[%s844 + $0x10] sm:$0xff] %v836
    %848 = vst [vmem:[%s844 + $0x18] sm:$0xff] %v841
    %v849 = vtanh.pop %v826
    %v850 = vtanh.pop %v831
    %v851 = vtanh.pop %v836
    %v852 = vtanh.pop %v841
    %s853 = scalar_lea.vmem [#allocation2], 112
    %v854 = vld [vmem:[%s853] sm:$0xff]
    %v855 = vld [vmem:[%s853 + $0x8] sm:$0xff]
    %s856 = scalar_lea.vmem %s2, 7
    %v857 = vld [vmem:[%s856] sm:$0x1]
    %v859 = vlaneseq
    %v860 = vshrl.u32 %v859, 7
    %v861 = vsub.s32 0, %v860
    %v862 = vrot.slane %v857, %v861
    %v865 = vsel %vm45, %v849, 0
    %v868 = vsel %vm45, %v850, 0
    %v871 = vsel %vm45, %v851, 0
    %v874 = vsel %vm45, %v852, 0
    %876 = vmatprep.subr.mxu0 0.0
    %877 = vmatpush1.msra.mxu0 0.0
    %878 = vmatprep.subr.mxu0 0.0
    %879 = vmatpush1.msra.mxu0 0.0
    %880 = vmatprep.subr.mxu0 0.0
    %881 = vmatpush1.msra.mxu0 0.0
    %882 = vmatprep.subr.mxu0 0.0
    %883 = vmatpush1.msra.mxu0 0.0
    %884 = vmatprep.subr.mxu0 0.0
    %885 = vmatpush1.msra.mxu0 0.0
    %886 = vmatprep.subr.mxu0 0.0
    %887 = vmatpush1.msra.mxu0 0.0
    %888 = vmatprep.subr.mxu0 0.0
    %889 = vmatpush1.msra.mxu0 0.0
    %890 = vmatprep.subr.mxu0 0.0
    %891 = vmatpush1.msra.mxu0 0.0
    %892 = vmatprep.subr.mxu0 0.0
    %893 = vmatpush1.msra.mxu0 0.0
    %894 = vmatprep.subr.mxu0 0.0
    %895 = vmatpush1.msra.mxu0 0.0
    %896 = vmatprep.subr.mxu0 0.0
    %897 = vmatpush1.msra.mxu0 0.0
    %898 = vmatprep.subr.mxu0 0.0
    %899 = vmatpush1.msra.mxu0 0.0
    %900 = vmatprep.subr.mxu0 0.0
    %901 = vmatpush1.msra.mxu0 0.0
    %902 = vmatprep.subr.mxu0 0.0
    %903 = vmatpush1.msra.mxu0 0.0
    %904 = vmatprep.subr.mxu0 0.0
    %905 = vmatpush1.msra.mxu0 %v855
    %906 = vmatprep.subr.mxu0 0.0
    %907 = vmatpush1.msra.mxu0 %v854
    %908 = vmatprep.subr.mxu0 0.0
    %909 = vmatpush2.msra.mxu0 0.0
    %910 = vmatprep.subr.mxu0 0.0
    %911 = vmatpush2.msra.mxu0 0.0
    %912 = vmatprep.subr.mxu0 0.0
    %913 = vmatpush2.msra.mxu0 0.0
    %914 = vmatprep.subr.mxu0 0.0
    %915 = vmatpush2.msra.mxu0 0.0
    %916 = vmatprep.subr.mxu0 0.0
    %917 = vmatpush2.msra.mxu0 0.0
    %918 = vmatprep.subr.mxu0 0.0
    %919 = vmatpush2.msra.mxu0 0.0
    %920 = vmatprep.subr.mxu0 0.0
    %921 = vmatpush2.msra.mxu0 0.0
    %922 = vmatprep.subr.mxu0 0.0
    %923 = vmatpush2.msra.mxu0 0.0
    %924 = vmatprep.subr.mxu0 0.0
    %925 = vmatpush2.msra.mxu0 0.0
    %926 = vmatprep.subr.mxu0 0.0
    %927 = vmatpush2.msra.mxu0 0.0
    %928 = vmatprep.subr.mxu0 0.0
    %929 = vmatpush2.msra.mxu0 0.0
    %930 = vmatprep.subr.mxu0 0.0
    %931 = vmatpush2.msra.mxu0 0.0
    %932 = vmatprep.subr.mxu0 0.0
    %933 = vmatpush2.msra.mxu0 0.0
    %934 = vmatprep.subr.mxu0 0.0
    %935 = vmatpush2.msra.mxu0 0.0
    %936 = vmatprep.subr.mxu0 0.0
    %937 = vmatpush2.msra.mxu0 0.0
    %938 = vmatprep.subr.mxu0 0.0
    %939 = vmatpush2.msra.mxu0 0.0
    %940 = vmatprep.mubr.f32.mxu0 0.0
    %941 = vmatmul.mubr.f32.gmra.mxu0 %v865
    %v942 = vpop.f32.mrf.mxu0
    %v943 = vadd.f32 %v862, %v942
    %v944 = vpop.f32.mrf.mxu0
    %945 = vmatprep.mubr.f32.mxu0 0.0
    %946 = vmatmul.mubr.f32.gmra.mxu0 %v868
    %v947 = vpop.f32.mrf.mxu0
    %v948 = vadd.f32 %v862, %v947
    %v949 = vpop.f32.mrf.mxu0
    %950 = vmatprep.mubr.f32.mxu0 0.0
    %951 = vmatmul.mubr.f32.gmra.mxu0 %v871
    %v952 = vpop.f32.mrf.mxu0
    %v953 = vadd.f32 %v862, %v952
    %v954 = vpop.f32.mrf.mxu0
    %955 = vmatprep.mubr.f32.mxu0 0.0
    %956 = vmatmul.mubr.f32.gmra.mxu0 %v874
    %v957 = vpop.f32.mrf.mxu0
    %v958 = vadd.f32 %v862, %v957
    %v959 = vpop.f32.mrf.mxu0
    %960 = vdwg.mxu0
    %s961 = scalar_lea.vmem [#allocation5], 224
    %962 = vst [vmem:[%s961] sm:$0xff] %v943
    %963 = vst [vmem:[%s961 + $0x8] sm:$0xff] %v948
    %964 = vst [vmem:[%s961 + $0x10] sm:$0xff] %v953
    %965 = vst [vmem:[%s961 + $0x18] sm:$0xff] %v958
    %v966 = vtanh.pop %v943
    %v967 = vtanh.pop %v948
    %v968 = vtanh.pop %v953
    %v969 = vtanh.pop %v958
    %s970 = scalar_lea.vmem [#allocation2], 128
    %v971 = vld [vmem:[%s970] sm:$0xff]
    %v972 = vld [vmem:[%s970 + $0x8] sm:$0xff]
    %s973 = scalar_lea.vmem %s2, 8
    %v974 = vld [vmem:[%s973] sm:$0x1]
    %v976 = vlaneseq
    %v977 = vshrl.u32 %v976, 7
    %v978 = vsub.s32 0, %v977
    %v979 = vrot.slane %v974, %v978
    %v982 = vsel %vm45, %v966, 0
    %v985 = vsel %vm45, %v967, 0
    %v988 = vsel %vm45, %v968, 0
    %v991 = vsel %vm45, %v969, 0
    %993 = vmatprep.subr.mxu0 0.0
    %994 = vmatpush1.msra.mxu0 0.0
    %995 = vmatprep.subr.mxu0 0.0
    %996 = vmatpush1.msra.mxu0 0.0
    %997 = vmatprep.subr.mxu0 0.0
    %998 = vmatpush1.msra.mxu0 0.0
    %999 = vmatprep.subr.mxu0 0.0
    %1000 = vmatpush1.msra.mxu0 0.0
    %1001 = vmatprep.subr.mxu0 0.0
    %1002 = vmatpush1.msra.mxu0 0.0
    %1003 = vmatprep.subr.mxu0 0.0
    %1004 = vmatpush1.msra.mxu0 0.0
    %1005 = vmatprep.subr.mxu0 0.0
    %1006 = vmatpush1.msra.mxu0 0.0
    %1007 = vmatprep.subr.mxu0 0.0
    %1008 = vmatpush1.msra.mxu0 0.0
    %1009 = vmatprep.subr.mxu0 0.0
    %1010 = vmatpush1.msra.mxu0 0.0
    %1011 = vmatprep.subr.mxu0 0.0
    %1012 = vmatpush1.msra.mxu0 0.0
    %1013 = vmatprep.subr.mxu0 0.0
    %1014 = vmatpush1.msra.mxu0 0.0
    %1015 = vmatprep.subr.mxu0 0.0
    %1016 = vmatpush1.msra.mxu0 0.0
    %1017 = vmatprep.subr.mxu0 0.0
    %1018 = vmatpush1.msra.mxu0 0.0
    %1019 = vmatprep.subr.mxu0 0.0
    %1020 = vmatpush1.msra.mxu0 0.0
    %1021 = vmatprep.subr.mxu0 0.0
    %1022 = vmatpush1.msra.mxu0 %v972
    %1023 = vmatprep.subr.mxu0 0.0
    %1024 = vmatpush1.msra.mxu0 %v971
    %1025 = vmatprep.subr.mxu0 0.0
    %1026 = vmatpush2.msra.mxu0 0.0
    %1027 = vmatprep.subr.mxu0 0.0
    %1028 = vmatpush2.msra.mxu0 0.0
    %1029 = vmatprep.subr.mxu0 0.0
    %1030 = vmatpush2.msra.mxu0 0.0
    %1031 = vmatprep.subr.mxu0 0.0
    %1032 = vmatpush2.msra.mxu0 0.0
    %1033 = vmatprep.subr.mxu0 0.0
    %1034 = vmatpush2.msra.mxu0 0.0
    %1035 = vmatprep.subr.mxu0 0.0
    %1036 = vmatpush2.msra.mxu0 0.0
    %1037 = vmatprep.subr.mxu0 0.0
    %1038 = vmatpush2.msra.mxu0 0.0
    %1039 = vmatprep.subr.mxu0 0.0
    %1040 = vmatpush2.msra.mxu0 0.0
    %1041 = vmatprep.subr.mxu0 0.0
    %1042 = vmatpush2.msra.mxu0 0.0
    %1043 = vmatprep.subr.mxu0 0.0
    %1044 = vmatpush2.msra.mxu0 0.0
    %1045 = vmatprep.subr.mxu0 0.0
    %1046 = vmatpush2.msra.mxu0 0.0
    %1047 = vmatprep.subr.mxu0 0.0
    %1048 = vmatpush2.msra.mxu0 0.0
    %1049 = vmatprep.subr.mxu0 0.0
    %1050 = vmatpush2.msra.mxu0 0.0
    %1051 = vmatprep.subr.mxu0 0.0
    %1052 = vmatpush2.msra.mxu0 0.0
    %1053 = vmatprep.subr.mxu0 0.0
    %1054 = vmatpush2.msra.mxu0 0.0
    %1055 = vmatprep.subr.mxu0 0.0
    %1056 = vmatpush2.msra.mxu0 0.0
    %1057 = vmatprep.mubr.f32.mxu0 0.0
    %1058 = vmatmul.mubr.f32.gmra.mxu0 %v982
    %v1059 = vpop.f32.mrf.mxu0
    %v1060 = vadd.f32 %v979, %v1059
    %v1061 = vpop.f32.mrf.mxu0
    %1062 = vmatprep.mubr.f32.mxu0 0.0
    %1063 = vmatmul.mubr.f32.gmra.mxu0 %v985
    %v1064 = vpop.f32.mrf.mxu0
    %v1065 = vadd.f32 %v979, %v1064
    %v1066 = vpop.f32.mrf.mxu0
    %1067 = vmatprep.mubr.f32.mxu0 0.0
    %1068 = vmatmul.mubr.f32.gmra.mxu0 %v988
    %v1069 = vpop.f32.mrf.mxu0
    %v1070 = vadd.f32 %v979, %v1069
    %v1071 = vpop.f32.mrf.mxu0
    %1072 = vmatprep.mubr.f32.mxu0 0.0
    %1073 = vmatmul.mubr.f32.gmra.mxu0 %v991
    %v1074 = vpop.f32.mrf.mxu0
    %v1075 = vadd.f32 %v979, %v1074
    %v1076 = vpop.f32.mrf.mxu0
    %1077 = vdwg.mxu0
    %1078 = vst [vmem:[#allocation6] sm:$0xff] %v1060
    %1079 = vst [vmem:[#allocation6 + $0x8] sm:$0xff] %v1065
    %1080 = vst [vmem:[#allocation6 + $0x10] sm:$0xff] %v1070
    %1081 = vst [vmem:[#allocation6 + $0x18] sm:$0xff] %v1075
    // Predicated region
    $region18: #{tpu_custom_call.1} parent=1 // pred_check
      _
    $region19: #{tpu_custom_call.1} parent=1 // pred_check_branch
      %1083 = sbr.rel (0) target = $region21
    $region20: #{tpu_custom_call.1} parent=1 // pred_region
      %s1085 = ssub.s32 4096, 4096
      %1086 = vsyncadd [#allocation4], %s1085
      %s1087 = sshll.u32 [#allocation5], 4
      %s1088 = int_to_ptr.vmem [resolvable:$true] %s1087
      %1093 = dma.vmem_to_hbm [thread:$0]  %s1088, 4096, %s3, [#allocation4], 128, 128, 8
    $region21: #{tpu_custom_call.1} parent=1 // pred_fallthru
      _
    // Predicated region
    $region22: #{tpu_custom_call.1} parent=1 // pred_check
      _
    $region23: #{tpu_custom_call.1} parent=1 // pred_check_branch
      %1095 = sbr.rel (0) target = $region25
    $region24: #{tpu_custom_call.1} parent=1 // pred_region
      %s1097 = ssub.s32 512, 512
      %1098 = vsyncadd [#allocation7], %s1097
      %s1099 = sshll.u32 [#allocation6], 4
      %s1100 = int_to_ptr.vmem [resolvable:$true] %s1099
      %1105 = dma.vmem_to_hbm [thread:$0]  %s1100, 512, %s4, [#allocation7], 128, 128, 8
    $region25: #{tpu_custom_call.1} parent=1 // pred_fallthru
      _
    // Predicated region
    $region26: #{tpu_custom_call.1} parent=1 // pred_check
      _
    $region27: #{tpu_custom_call.1} parent=1 // pred_check_branch
      %1107 = sbr.rel (0) target = $region29
    $region28: #{tpu_custom_call.1} parent=1 // pred_region
      %1108 = dma.done [#allocation4], 4096
    $region29: #{tpu_custom_call.1} parent=1 // pred_fallthru
      _
    // Predicated region
    $region30: #{tpu_custom_call.1} parent=1 // pred_check
      _
    $region31: #{tpu_custom_call.1} parent=1 // pred_check_branch
      %1110 = sbr.rel (0) target = $region33
    $region32: #{tpu_custom_call.1} parent=1 // pred_region
      %1111 = dma.done [#allocation7], 512
    $region33: #{tpu_custom_call.1} parent=1 // pred_fallthru
      _
    %1112 = vsyncpa [#allocation3], 1
    %1113 = vsyncpa [#allocation4], 1
    %1114 = vsyncpa [#allocation7], 1

</llo_original>
